<compile_context>
chip_gen: v7x
topology: tpu7x:2x2x1
jax: 0.10.0
libtpu: 0.0.40
codegen_flags: <defaults>
</compile_context>

<pallas_src>
import functools
from typing import NamedTuple

import jax
import jax.numpy as jnp
from jax.experimental import pallas as pl
from jax.experimental.pallas import tpu as pltpu

HIDDEN = 512
LANE = 128
SUBLANE = 8


def _round_up(n, m):
    return ((n + m - 1) // m) * m


def _cdiv(a, b):
    return -(-a // b)


# ---------------------------------------------------------------------------
# TPU generation / VMEM budget detection (best effort, conservative fallback).
# ---------------------------------------------------------------------------
def _tpu_target():
    kind = ""
    try:
        kind = jax.devices()[0].device_kind.lower()
    except Exception:
        pass
    if "v5" in kind:
        return "v5e", 96 * 1024 * 1024       # 128 MiB physical VMEM
    if "v6" in kind:
        return "v6e", 96 * 1024 * 1024       # 128 MiB physical VMEM
    if "7" in kind:
        return "v7x", 48 * 1024 * 1024       # 64 MiB physical VMEM -> keep headroom
    return None, 48 * 1024 * 1024            # unknown chip: be conservative


def _pick_block_m(B, gen):
    if gen == "v7x":
        # Two TensorCores per chip: ~B/2 rows per tile so both get work; prefer an
        # even number of grid steps for core balance.
        block_m = min(256, _round_up(max(SUBLANE, _cdiv(B, 2)), SUBLANE))
        grid_m = _cdiv(B, block_m)
        if grid_m > 1 and grid_m % 2:
            block_m = min(256, _round_up(max(SUBLANE, _cdiv(B, grid_m + 1)), SUBLANE))
    elif gen == "v6e":
        # Single TensorCore, 2x256^2 MXU: one big tile; 256 rows for large batches.
        block_m = min(256 if B >= 512 else 128, _round_up(B, SUBLANE))
    else:
        # v5e / unknown: single core, 128-wide MXU M dimension.
        block_m = min(128, _round_up(B, SUBLANE))
    block_m = max(SUBLANE, block_m)
    # Prefer a nearby tile size that divides B exactly -> skips the x pad copy.
    if B % block_m:
        for cand in range(block_m, max(SUBLANE, block_m // 2) - 1, -SUBLANE):
            if B % cand == 0:
                block_m = cand
                break
    return block_m


# ---------------------------------------------------------------------------
# One-time eager probe: is pl.Buffered(1) (single-buffered constant operands)
# accepted by this jax/libtpu combination?  Keeps the real kernel build free of
# broad try/except and works even when clf_head is wrapped in an outer jit.
# ---------------------------------------------------------------------------
_SINGLE_BUFFER_OK = None


def _single_buffer_supported():
    global _SINGLE_BUFFER_OK
    if _SINGLE_BUFFER_OK is None:
        def _probe(a_ref, o_ref):
            o_ref[...] = a_ref[...]
        try:
            out = pl.pallas_call(
                _probe,
                out_shape=jax.ShapeDtypeStruct((SUBLANE, LANE), jnp.float32),
                grid_spec=pltpu.PrefetchScalarGridSpec(
                    num_scalar_prefetch=0,
                    grid=(1,),
                    in_specs=[pl.BlockSpec((SUBLANE, LANE), lambda i: (0, 0),
                                           pipeline_mode=pl.Buffered(1))],
                    out_specs=pl.BlockSpec((SUBLANE, LANE), lambda i: (0, 0)),
                ),
            )(jnp.zeros((SUBLANE, LANE), jnp.float32))
            jax.block_until_ready(out)
            _SINGLE_BUFFER_OK = True
        except Exception:
            _SINGLE_BUFFER_OK = False
    return _SINGLE_BUFFER_OK


# ---------------------------------------------------------------------------
# Kernels
# ---------------------------------------------------------------------------
def _clf_head_kernel(x_ref, w1_ref, b1_ref, w2_ref, b2_ref, o_ref):
    # x_ref: (bm, F) x.dtype | w1_ref: (F, 512) bf16 | b1_ref: (1, 512) f32
    # w2_ref: (512, Op) bf16 | b2_ref: (1, Op) f32   | o_ref:  (bm, Op) x.dtype
    x_bf = x_ref[...].astype(jnp.bfloat16)            # VPU cast, hidden under the MXU
    h = jnp.dot(x_bf, w1_ref[...], preferred_element_type=jnp.float32)
    h = jnp.maximum(h + b1_ref[...], 0.0)              # bias + ReLU in f32
    y = jnp.dot(h.astype(jnp.bfloat16), w2_ref[...],
                preferred_element_type=jnp.float32)
    o_ref[...] = (y + b2_ref[...]).astype(o_ref.dtype)


def _clf_head_kernel_ktiled(x_ref, w1_ref, b1_ref, w2_ref, b2_ref, o_ref, acc_ref):
    # Used only when W1 is too large to stay resident in VMEM (very large F).
    k = pl.program_id(1)

    @pl.when(k == 0)
    def _():
        acc_ref[...] = jnp.zeros_like(acc_ref)

    acc_ref[...] += jnp.dot(x_ref[...].astype(jnp.bfloat16), w1_ref[...],
                            preferred_element_type=jnp.float32)

    @pl.when(k == pl.num_programs(1) - 1)
    def _():
        h = jnp.maximum(acc_ref[...] + b1_ref[...], 0.0)
        y = jnp.dot(h.astype(jnp.bfloat16), w2_ref[...],
                    preferred_element_type=jnp.float32)
        o_ref[...] = (y + b2_ref[...]).astype(o_ref.dtype)


# ---------------------------------------------------------------------------
# Init-time parameter prep (hoisted out of the per-call path)
# ---------------------------------------------------------------------------
class ClfHeadParams(NamedTuple):
    w1: jax.Array      # (F, 512) bf16  == PyTorch regression[0].weight.T
    b1: jax.Array      # (1, 512) f32
    w2: jax.Array      # (512, O_pad) bf16, lane-padded == regression[2].weight.T
    b2: jax.Array      # (1, O_pad) f32, lane-padded
    num_outputs: int   # unpadded O


def prepare_clf_head_params(w1, b1, w2, b2):
    """One-time weight prep: bf16 cast + lane padding of the output dim."""
    F, H = w1.shape
    assert H == HIDDEN and w2.shape[0] == HIDDEN
    O = w2.shape[1]
    O_pad = _round_up(O, LANE)
    w1_bf = jnp.asarray(w1, jnp.bfloat16)
    w2_bf = jnp.pad(jnp.asarray(w2, jnp.bfloat16), ((0, 0), (0, O_pad - O)))
    b1_2d = jnp.asarray(b1, jnp.float32).reshape(1, HIDDEN)
    b2_2d = jnp.pad(jnp.asarray(b2, jnp.float32).reshape(1, O),
                    ((0, 0), (0, O_pad - O)))
    return ClfHeadParams(w1_bf, b1_2d, w2_bf, b2_2d, O)


def _pick_block_k(F, block_m, O_pad, xb, ob, wbuf, vmem_cap):
    fixed = (wbuf * (HIDDEN * O_pad * 2 + HIDDEN * 4 + O_pad * 4)
             + block_m * HIDDEN * 4                    # f32 accumulator scratch
             + 2 * block_m * O_pad * ob)               # double-buffered out tiles
    cands = [c for c in (4096, 2048, 1024, 512, 256, 128)
             if fixed + 2 * block_m * c * xb + 2 * c * HIDDEN * 2 <= vmem_cap]
    if not cands:
        cands = [128]
    for c in cands:            # prefer a chunk that divides F -> no F padding
        if F % c == 0:
            return c
    return cands[0]


# ---------------------------------------------------------------------------
# Forward pass
# ---------------------------------------------------------------------------
def clf_head(x, params, *, block_m=None):
    """x: (..., F) -> (..., num_outputs), matching ClfHead.forward."""
    lead_shape = x.shape[:-1]
    F = x.shape[-1]
    x2 = x.reshape(-1, F)
    B = x2.shape[0]

    w1_bf, b1_2d, w2_bf, b2_2d, O = params
    assert w1_bf.shape == (F, HIDDEN), "params feature_dim mismatch"
    O_pad = w2_bf.shape[1]

    gen, vmem_cap = _tpu_target()
    if block_m is None:
        block_m = _pick_block_m(B, gen)
    assert block_m % SUBLANE == 0, "block_m must be a multiple of 8 (sublane rule)"

    B_pad = _round_up(max(B, block_m), block_m)
    grid_m = B_pad // block_m
    x_in = x2 if B_pad == B else jnp.pad(x2, ((0, B_pad - B), (0, 0)))

    out_dtype = x.dtype
    xb = jnp.dtype(x.dtype).itemsize
    ob = jnp.dtype(out_dtype).itemsize

    wbuf = 1 if _single_buffer_supported() else 2
    const_bytes = wbuf * (HIDDEN * O_pad * 2 + HIDDEN * 4 + O_pad * 4)
    io_bytes = 2 * block_m * F * xb + 2 * block_m * O_pad * ob
    resident_need = wbuf * F * HIDDEN * 2 + const_bytes + io_bytes + block_m * HIDDEN * 4

    def const_spec(shape, ngrid):
        idx = (lambda i: (0, 0)) if ngrid == 1 else (lambda i, k: (0, 0))
        if wbuf == 1:
            return pl.BlockSpec(shape, idx, pipeline_mode=pl.Buffered(1))
        return pl.BlockSpec(shape, idx)

    flops = 2 * B_pad * F * HIDDEN + 2 * B_pad * HIDDEN * O_pad
    bytes_accessed = (B_pad * F * xb + F * HIDDEN * 2 + HIDDEN * O_pad * 2
                      + HIDDEN * 4 + O_pad * 4 + B_pad * O_pad * ob)
    cost = pl.CostEstimate(flops=flops, transcendentals=0,
                           bytes_accessed=bytes_accessed)

    if resident_need <= vmem_cap:
        # --- W1 resident in VMEM; single grid axis over the batch ----------------
        cp_kwargs = dict(dimension_semantics=(pltpu.PARALLEL,))
        # TODO(synk): evaluate pltpu.CORE_PARALLEL for the batch axis on v7x hardware.
        if resident_need > 16 * 1024 * 1024:
            cp_kwargs["vmem_limit_bytes"] = int(
                min(_round_up(resident_need * 5 // 4, 1 << 20), vmem_cap))
        out_pad = pl.pallas_call(
            _clf_head_kernel,
            out_shape=jax.ShapeDtypeStruct((B_pad, O_pad), out_dtype),
            grid_spec=pltpu.PrefetchScalarGridSpec(
                num_scalar_prefetch=0,
                grid=(grid_m,),
                in_specs=[
                    pl.BlockSpec((block_m, F), lambda i: (i, 0)),   # x tile
                    const_spec((F, HIDDEN), 1),                     # W1 (resident)
                    const_spec((1, HIDDEN), 1),                     # b1
                    const_spec((HIDDEN, O_pad), 1),                 # W2 (resident)
                    const_spec((1, O_pad), 1),                      # b2
                ],
                out_specs=pl.BlockSpec((block_m, O_pad), lambda i: (i, 0)),
            ),
            compiler_params=pltpu.CompilerParams(**cp_kwargs),
            cost_estimate=cost,
        )(x_in, w1_bf, b1_2d, w2_bf, b2_2d)
    else:
        # --- W1 too big for VMEM: K-tile the feature dim with an f32 accumulator --
        block_k = _pick_block_k(F, block_m, O_pad, xb, ob, wbuf, vmem_cap)
        F_pad = _round_up(F, block_k)
        if F_pad != F:    # rare huge-F fallback; zero padding is exact for the matmul
            x_in = jnp.pad(x_in, ((0, 0), (0, F_pad - F)))
            w1_k = jnp.pad(w1_bf, ((0, F_pad - F), (0, 0)))
        else:
            w1_k = w1_bf
        grid_k = F_pad // block_k
        need = (const_bytes + 2 * block_m * block_k * xb + 2 * block_k * HIDDEN * 2
                + block_m * HIDDEN * 4 + 2 * block_m * O_pad * ob)
        cp_kwargs = dict(
            dimension_semantics=(pltpu.PARALLEL, pltpu.ARBITRARY),
            vmem_limit_bytes=int(min(_round_up(need * 5 // 4, 1 << 20), vmem_cap)),
        )
        out_pad = pl.pallas_call(
            _clf_head_kernel_ktiled,
            out_shape=jax.ShapeDtypeStruct((B_pad, O_pad), out_dtype),
            grid_spec=pltpu.PrefetchScalarGridSpec(
                num_scalar_prefetch=0,
                grid=(grid_m, grid_k),
                in_specs=[
                    pl.BlockSpec((block_m, block_k), lambda i, k: (i, k)),  # x tile
                    pl.BlockSpec((block_k, HIDDEN), lambda i, k: (k, 0)),   # W1 tile
                    const_spec((1, HIDDEN), 2),                             # b1
                    const_spec((HIDDEN, O_pad), 2),                         # W2
                    const_spec((1, O_pad), 2),                              # b2
                ],
                out_specs=pl.BlockSpec((block_m, O_pad), lambda i, k: (i, 0)),
                scratch_shapes=[pltpu.VMEM((block_m, HIDDEN), jnp.float32)],
            ),
            compiler_params=pltpu.CompilerParams(**cp_kwargs),
            cost_estimate=cost,
        )(x_in, w1_k, b1_2d, w2_bf, b2_2d)

    out = out_pad
    if B_pad != B or O_pad != O:
        out = out[:B, :O]
    return out.reshape(lead_shape + (O,))


if __name__ == "__main__":
    # Small shapes consistent with the module: feature_dim=32, num_outputs=16, batch=8.
    batch, feature_dim, num_outputs = 8, 32, 16

    key = jax.random.PRNGKey(0)
    kx, kw1, kb1, kw2, kb2 = jax.random.split(key, 5)

    x = jax.random.normal(kx, (batch, feature_dim), dtype=jnp.float32)
    # Parameters stored as (in, out), i.e. the PyTorch nn.Linear weights transposed.
    w1 = jax.random.normal(kw1, (feature_dim, HIDDEN), dtype=jnp.float32) * 0.05
    b1 = jax.random.normal(kb1, (HIDDEN,), dtype=jnp.float32) * 0.05
    w2 = jax.random.normal(kw2, (HIDDEN, num_outputs), dtype=jnp.float32) * 0.05
    b2 = jax.random.normal(kb2, (num_outputs,), dtype=jnp.float32) * 0.05

    # One-time, init-time weight prep (hoisted out of the per-call path).
    params = prepare_clf_head_params(w1, b1, w2, b2)

    fwd = jax.jit(functools.partial(clf_head, params=params))
    out = fwd(x)
    jax.block_until_ready(out)

    # Reference check in plain JAX (same math as the PyTorch forward).
    ref = jnp.maximum(x @ w1 + b1, 0.0) @ w2 + b2
    assert out.shape == (batch, num_outputs)
    assert out.dtype == x.dtype
    # bf16 MXU operands with f32 accumulation: ~1e-2-level agreement vs the f32 ref.
    assert jnp.allclose(out, ref, atol=2e-2, rtol=2e-2)

    print("KERNEL_OK")
</pallas_src>

<mosaic_0001>
module attributes {stable_mosaic.version = 11 : i64} {
  func.func @_clf_head_kernel(%arg0: i32, %arg1: memref<8x32xf32, #tpu.memory_space<vmem>>, %arg2: memref<32x512xbf16, #tpu.memory_space<vmem>>, %arg3: memref<1x512xf32, #tpu.memory_space<vmem>>, %arg4: memref<512x128xbf16, #tpu.memory_space<vmem>>, %arg5: memref<1x128xf32, #tpu.memory_space<vmem>>, %arg6: memref<8x128xf32, #tpu.memory_space<vmem>>) attributes {dimension_semantics = [#tpu.dimension_semantics<parallel>], iteration_bounds = array<i64: 1>, scalar_prefetch = 0 : i64, scratch_operands = 0 : i64, tpu.core_type = #tpu.core_type<tc>, window_params = [{transform_indices = @transform_0, window_bounds = array<i64: 8, 32>}, {pipeline_mode = #tpu.pipeline_mode<synchronous>, transform_indices = @transform_1, window_bounds = array<i64: 32, 512>}, {pipeline_mode = #tpu.pipeline_mode<synchronous>, transform_indices = @transform_2, window_bounds = array<i64: 1, 512>}, {pipeline_mode = #tpu.pipeline_mode<synchronous>, transform_indices = @transform_3, window_bounds = array<i64: 512, 128>}, {pipeline_mode = #tpu.pipeline_mode<synchronous>, transform_indices = @transform_4, window_bounds = array<i64: 1, 128>}, {transform_indices = @transform_5, window_bounds = array<i64: 8, 128>}]} {
    %c0 = arith.constant 0 : index
    %c0_0 = arith.constant 0 : index
    %0 = vector.load %arg1[%c0, %c0_0] : memref<8x32xf32, #tpu.memory_space<vmem>>, vector<8x32xf32>
    %1 = arith.truncf %0 : vector<8x32xf32> to vector<8x32xbf16>
    %c0_1 = arith.constant 0 : index
    %c0_2 = arith.constant 0 : index
    %2 = vector.load %arg2[%c0_1, %c0_2] : memref<32x512xbf16, #tpu.memory_space<vmem>>, vector<32x512xbf16>
    %cst = arith.constant dense<0.000000e+00> : vector<8x512xf32>
    %3 = tpu.matmul %1, %2, %cst {dimension_numbers = #tpu.dot_dimension_numbers<[1], [0], [0], [1], [0, 0, 1, 1], [], []>} : vector<8x32xbf16>, vector<32x512xbf16>, vector<8x512xf32> -> vector<8x512xf32>
    %c0_3 = arith.constant 0 : index
    %c0_4 = arith.constant 0 : index
    %4 = vector.load %arg3[%c0_3, %c0_4] : memref<1x512xf32, #tpu.memory_space<vmem>>, vector<1x512xf32>
    %5 = vector.broadcast %4 : vector<1x512xf32> to vector<8x512xf32>
    %6 = arith.addf %3, %5 : vector<8x512xf32>
    %cst_5 = arith.constant 0.000000e+00 : f32
    %7 = vector.broadcast %cst_5 : f32 to vector<8x512xf32>
    %8 = arith.maximumf %6, %7 : vector<8x512xf32>
    %9 = arith.truncf %8 : vector<8x512xf32> to vector<8x512xbf16>
    %c0_6 = arith.constant 0 : index
    %c0_7 = arith.constant 0 : index
    %10 = vector.load %arg4[%c0_6, %c0_7] : memref<512x128xbf16, #tpu.memory_space<vmem>>, vector<512x128xbf16>
    %cst_8 = arith.constant dense<0.000000e+00> : vector<8x128xf32>
    %11 = tpu.matmul %9, %10, %cst_8 {dimension_numbers = #tpu.dot_dimension_numbers<[1], [0], [0], [1], [0, 0, 1, 1], [], []>} : vector<8x512xbf16>, vector<512x128xbf16>, vector<8x128xf32> -> vector<8x128xf32>
    %c0_9 = arith.constant 0 : index
    %c0_10 = arith.constant 0 : index
    %12 = vector.load %arg5[%c0_9, %c0_10] : memref<1x128xf32, #tpu.memory_space<vmem>>, vector<1x128xf32>
    %13 = vector.broadcast %12 : vector<1x128xf32> to vector<8x128xf32>
    %14 = arith.addf %11, %13 : vector<8x128xf32>
    %c0_11 = arith.constant 0 : index
    %c0_12 = arith.constant 0 : index
    %15 = vector.load %arg6[%c0_11, %c0_12] : memref<8x128xf32, #tpu.memory_space<vmem>>, vector<8x128xf32>
    tpu.vector_store %arg6[%c0_11, %c0_12], %14 {strides = array<i32>} : memref<8x128xf32, #tpu.memory_space<vmem>>, vector<8x128xf32>,
    return
  }
  func.func @transform_0(%arg0: i32) -> (i32, i32) {
    %c0_i32 = arith.constant 0 : i32
    %c0_i32_0 = arith.constant 0 : i32
    return %arg0, %c0_i32 : i32, i32
  }
  func.func @transform_1(%arg0: i32) -> (i32, i32) {
    %c0_i32 = arith.constant 0 : i32
    %c0_i32_0 = arith.constant 0 : i32
    %c0_i32_1 = arith.constant 0 : i32
    return %c0_i32, %c0_i32_0 : i32, i32
  }
  func.func @transform_2(%arg0: i32) -> (i32, i32) {
    %c0_i32 = arith.constant 0 : i32
    %c0_i32_0 = arith.constant 0 : i32
    %c0_i32_1 = arith.constant 0 : i32
    return %c0_i32, %c0_i32_0 : i32, i32
  }
  func.func @transform_3(%arg0: i32) -> (i32, i32) {
    %c0_i32 = arith.constant 0 : i32
    %c0_i32_0 = arith.constant 0 : i32
    %c0_i32_1 = arith.constant 0 : i32
    return %c0_i32, %c0_i32_0 : i32, i32
  }
  func.func @transform_4(%arg0: i32) -> (i32, i32) {
    %c0_i32 = arith.constant 0 : i32
    %c0_i32_0 = arith.constant 0 : i32
    %c0_i32_1 = arith.constant 0 : i32
    return %c0_i32, %c0_i32_0 : i32, i32
  }
  func.func @transform_5(%arg0: i32) -> (i32, i32) {
    %c0_i32 = arith.constant 0 : i32
    %c0_i32_0 = arith.constant 0 : i32
    return %arg0, %c0_i32 : i32, i32
  }
}

</mosaic_0001>

<llo_original>
// kernel: clf_head.1
$region0: #{clf_head.1}
  #allocation0 [shape = 'u32[]', space=smem, size = 0x4, offset = 0x4, fixed_abs, tag = 'smem constant byte address 0x4 - core index']
  #allocation1 [shape = 'u32[144,128]{1,0:T(1,128)}', space=vmem, size = 0x12000, scoped, tag = 'internal scratch']
  %s0 = inlined_call_operand.vmem [shape: f32[8,32], index: 0, kind: input, shape index: {}]
  %s1 = inlined_call_operand.vmem [shape: bf16[32,512], index: 1, kind: input, shape index: {}]
  %s2 = inlined_call_operand.vmem [shape: f32[1,512], index: 2, kind: input, shape index: {}]
  %s3 = inlined_call_operand.hbm [shape: bf16[512,128], index: 3, kind: input, shape index: {}]
  %s4 = inlined_call_operand.vmem [shape: f32[1,128], index: 4, kind: input, shape index: {}]
  %s5 = inlined_call_operand.hbm [shape: f32[8,128], index: 5, kind: output, shape index: {}]
  %s6 = sld [smem:[#allocation0]]
  $region34: #{clf_head.1} parent=0
    _
  %s8 = ssub.s32 1, %s6
  %s9 = scalar_select 0, %s8, %s6
  $region1: #{clf_head.1} parent=0
    #allocation2 [shape = 'u8[131072]{0}', space=vmem, size = 0x20000, scoped, tag = 'input window, operand 3, single buffered']
    #allocation3 [shape = 's32[1]{0}', space=sflag, size = 0x4, scoped, tag = 'scoped memory for clf_head.1']
    #allocation4 [shape = 's32[1]{0}', space=sflag, size = 0x4, scoped, tag = 'scoped memory for clf_head.1']
    #allocation5 [shape = 'u8[4096]{0}', space=vmem, size = 0x1000, scoped, tag = 'output window, operand 0, single buffered']
    %10 = vsyncpa [#allocation3], 0
    %11 = vsyncpa [#allocation4], 0
    // Predicated region
    $region2: #{clf_head.1} parent=1 // pred_check
      _
    $region3: #{clf_head.1} parent=1 // pred_check_branch
      %13 = sbr.rel (0) target = $region5
    $region4: #{clf_head.1} parent=1 // pred_region
      _
    $region5: #{clf_head.1} parent=1 // pred_fallthru
      _
    // Predicated region
    $region6: #{clf_head.1} parent=1 // pred_check
      _
    $region7: #{clf_head.1} parent=1 // pred_check_branch
      %15 = sbr.rel (0) target = $region9
    $region8: #{clf_head.1} parent=1 // pred_region
      _
    $region9: #{clf_head.1} parent=1 // pred_fallthru
      _
    // Predicated region
    $region10: #{clf_head.1} parent=1 // pred_check
      _
    $region11: #{clf_head.1} parent=1 // pred_check_branch
      %17 = sbr.rel (0) target = $region13
    $region12: #{clf_head.1} parent=1 // pred_region
      _
    $region13: #{clf_head.1} parent=1 // pred_fallthru
      _
    // Predicated region
    $region14: #{clf_head.1} parent=1 // pred_check
      _
    $region15: #{clf_head.1} parent=1 // pred_check_branch
      %19 = sbr.rel (0) target = $region17
    $region16: #{clf_head.1} parent=1 // pred_region
      %s21 = ssub.s32 4096, 4096
      %22 = vsyncadd [#allocation3], %s21
      %s23 = sshll.u32 [#allocation2], 4
      %s24 = int_to_ptr.vmem [resolvable:$true] %s23
      %29 = dma.hbm_to_vmem [thread:$0]  %s3, 4096, %s24, [#allocation3], 64, 64, 4
    $region17: #{clf_head.1} parent=1 // pred_fallthru
      _
    // Predicated region
    $region18: #{clf_head.1} parent=1 // pred_check
      _
    $region19: #{clf_head.1} parent=1 // pred_check_branch
      %31 = sbr.rel (0) target = $region21
    $region20: #{clf_head.1} parent=1 // pred_region
      _
    $region21: #{clf_head.1} parent=1 // pred_fallthru
      _
    // Predicated region
    $region22: #{clf_head.1} parent=1 // pred_check
      _
    $region23: #{clf_head.1} parent=1 // pred_check_branch
      %33 = sbr.rel (0) target = $region25
    $region24: #{clf_head.1} parent=1 // pred_region
      %34 = dma.done [#allocation3], 4096
    $region25: #{clf_head.1} parent=1 // pred_fallthru
      _
    %v36 = vld [vmem:[%s0] sm:$0xff]
    %v37 = vpack.c.bf16 %v36, %v36
    %v38 = vld [vmem:[%s1] sm:$0xff]
    %v39 = vld [vmem:[%s1 + $0x8] sm:$0xff]
    %v40 = vld [vmem:[%s1 + $0x10] sm:$0xff]
    %v41 = vld [vmem:[%s1 + $0x18] sm:$0xff]
    %v42 = vld [vmem:[%s1 + $0x20] sm:$0xff]
    %v43 = vld [vmem:[%s1 + $0x28] sm:$0xff]
    %v44 = vld [vmem:[%s1 + $0x30] sm:$0xff]
    %v45 = vld [vmem:[%s1 + $0x38] sm:$0xff]
    %v46 = vld [vmem:[%s2] sm:$0xf]
    %v48 = vlaneseq
    %v49 = vshrl.u32 %v48, 7
    %v50 = vsub.s32 0, %v49
    %v51 = vrot.slane %v46, %v50
    %v52 = vlaneseq
    %v53 = vshrl.u32 %v52, 7
    %v54 = vsub.s32 1, %v53
    %v55 = vrot.slane %v46, %v54
    %v56 = vlaneseq
    %v57 = vshrl.u32 %v56, 7
    %v58 = vsub.s32 2, %v57
    %v59 = vrot.slane %v46, %v58
    %v60 = vlaneseq
    %v61 = vshrl.u32 %v60, 7
    %v62 = vsub.s32 3, %v61
    %v63 = vrot.slane %v46, %v62
    %v76 = vunpack.c.l.b16 %v38
    %v77 = vunpack.c.h.b16 %v38
    %v78 = vunpack.c.l.b16 %v39
    %v79 = vunpack.c.h.b16 %v39
    %v80 = vunpack.c.l.b16 %v40
    %v81 = vunpack.c.h.b16 %v40
    %v82 = vunpack.c.l.b16 %v41
    %v83 = vunpack.c.h.b16 %v41
    %v84 = vunpack.c.l.b16 %v42
    %v85 = vunpack.c.h.b16 %v42
    %v86 = vunpack.c.l.b16 %v43
    %v87 = vunpack.c.h.b16 %v43
    %v88 = vunpack.c.l.b16 %v44
    %v89 = vunpack.c.h.b16 %v44
    %v90 = vunpack.c.l.b16 %v45
    %v91 = vunpack.c.h.b16 %v45
    %v92 = vpack.c.b16 %v80, %v76
    %v93 = vpack.c.b16 %v81, %v77
    %v94 = vpack.c.b16 %v82, %v78
    %v95 = vpack.c.b16 %v83, %v79
    %v96 = vpack.c.b16 %v88, %v84
    %v97 = vpack.c.b16 %v89, %v85
    %v98 = vpack.c.b16 %v90, %v86
    %v99 = vpack.c.b16 %v91, %v87
    %vm108 = vcmask 261120
    %v110 = vsel %vm108, %v37, 0
    %112 = vmatprep.subr.bf16.mxu0 %v93
    %113 = vmatpush1.bf16.msra.mxu0 %v92
    %114 = vmatprep.subr.bf16.mxu0 %v97
    %115 = vmatpush1.bf16.msra.mxu0 %v96
    %116 = vmatprep.subr.bf16.mxu0 0
    %117 = vmatpush1.bf16.msra.mxu0 0
    %118 = vmatprep.subr.bf16.mxu0 0
    %119 = vmatpush1.bf16.msra.mxu0 0
    %120 = vmatprep.subr.bf16.mxu0 0
    %121 = vmatpush1.bf16.msra.mxu0 0
    %122 = vmatprep.subr.bf16.mxu0 0
    %123 = vmatpush1.bf16.msra.mxu0 0
    %124 = vmatprep.subr.bf16.mxu0 0
    %125 = vmatpush1.bf16.msra.mxu0 0
    %126 = vmatprep.subr.bf16.mxu0 0
    %127 = vmatpush1.bf16.msra.mxu0 0
    %128 = vmatprep.subr.bf16.mxu0 0
    %129 = vmatpush1.bf16.msra.mxu0 0
    %130 = vmatprep.subr.bf16.mxu0 0
    %131 = vmatpush1.bf16.msra.mxu0 0
    %132 = vmatprep.subr.bf16.mxu0 0
    %133 = vmatpush1.bf16.msra.mxu0 0
    %134 = vmatprep.subr.bf16.mxu0 0
    %135 = vmatpush1.bf16.msra.mxu0 0
    %136 = vmatprep.subr.bf16.mxu0 0
    %137 = vmatpush1.bf16.msra.mxu0 0
    %138 = vmatprep.subr.bf16.mxu0 0
    %139 = vmatpush1.bf16.msra.mxu0 0
    %140 = vmatprep.subr.bf16.mxu0 0
    %141 = vmatpush1.bf16.msra.mxu0 0
    %142 = vmatprep.subr.bf16.mxu0 0
    %143 = vmatpush1.bf16.msra.mxu0 0
    %144 = vmatprep.mubr.bf16.mxu0 0
    %145 = vmatmul.mubr.bf16.gmra.mrb[0].mxu0 %v110
    %v146 = vpop.f32.mrb[0].mxu0
    %v147 = vadd.f32 %v51, %v146
    %v148 = vpop.f32.mrb[0].mxu0
    %v149 = vadd.f32 %v55, %v148
    %v150 = vpop.f32.mrb[0].mxu0
    %v151 = vpop.f32.mrb[0].mxu0
    %152 = vdwg.mxu0
    %153 = vmatprep.subr.bf16.mxu0 %v95
    %154 = vmatpush1.bf16.msra.mxu0 %v94
    %155 = vmatprep.subr.bf16.mxu0 %v99
    %156 = vmatpush1.bf16.msra.mxu0 %v98
    %157 = vmatprep.subr.bf16.mxu0 0
    %158 = vmatpush1.bf16.msra.mxu0 0
    %159 = vmatprep.subr.bf16.mxu0 0
    %160 = vmatpush1.bf16.msra.mxu0 0
    %161 = vmatprep.subr.bf16.mxu0 0
    %162 = vmatpush1.bf16.msra.mxu0 0
    %163 = vmatprep.subr.bf16.mxu0 0
    %164 = vmatpush1.bf16.msra.mxu0 0
    %165 = vmatprep.subr.bf16.mxu0 0
    %166 = vmatpush1.bf16.msra.mxu0 0
    %167 = vmatprep.subr.bf16.mxu0 0
    %168 = vmatpush1.bf16.msra.mxu0 0
    %169 = vmatprep.subr.bf16.mxu0 0
    %170 = vmatpush1.bf16.msra.mxu0 0
    %171 = vmatprep.subr.bf16.mxu0 0
    %172 = vmatpush1.bf16.msra.mxu0 0
    %173 = vmatprep.subr.bf16.mxu0 0
    %174 = vmatpush1.bf16.msra.mxu0 0
    %175 = vmatprep.subr.bf16.mxu0 0
    %176 = vmatpush1.bf16.msra.mxu0 0
    %177 = vmatprep.subr.bf16.mxu0 0
    %178 = vmatpush1.bf16.msra.mxu0 0
    %179 = vmatprep.subr.bf16.mxu0 0
    %180 = vmatpush1.bf16.msra.mxu0 0
    %181 = vmatprep.subr.bf16.mxu0 0
    %182 = vmatpush1.bf16.msra.mxu0 0
    %183 = vmatprep.subr.bf16.mxu0 0
    %184 = vmatpush1.bf16.msra.mxu0 0
    %185 = vmatprep.mubr.bf16.mxu0 0
    %186 = vmatmul.mubr.bf16.gmra.mrb[0].mxu0 %v110
    %v187 = vpop.f32.mrb[0].mxu0
    %v188 = vadd.f32 %v59, %v187
    %v189 = vpop.f32.mrb[0].mxu0
    %v190 = vadd.f32 %v63, %v189
    %v191 = vpop.f32.mrb[0].mxu0
    %v192 = vpop.f32.mrb[0].mxu0
    %193 = vdwg.mxu0
    %v194 = vmax.f32 %v147, 0.0
    %v195 = vmax.f32 %v149, 0.0
    %v196 = vmax.f32 %v188, 0.0
    %v197 = vmax.f32 %v190, 0.0
    %v198 = vpack.c.bf16 %v194, %v194
    %v199 = vpack.c.bf16 %v195, %v195
    %v200 = vpack.c.bf16 %v196, %v196
    %v201 = vpack.c.bf16 %v197, %v197
    %v202 = vld [vmem:[#allocation2] sm:$0xf]
    %v203 = vld [vmem:[#allocation2 + $0x4] sm:$0xf]
    %v204 = vld [vmem:[#allocation2 + $0x8] sm:$0xf]
    %v205 = vld [vmem:[#allocation2 + $0xc] sm:$0xf]
    %v206 = vld [vmem:[#allocation2 + $0x10] sm:$0xf]
    %v207 = vld [vmem:[#allocation2 + $0x14] sm:$0xf]
    %v208 = vld [vmem:[#allocation2 + $0x18] sm:$0xf]
    %v209 = vld [vmem:[#allocation2 + $0x1c] sm:$0xf]
    %v210 = vld [vmem:[#allocation2 + $0x20] sm:$0xf]
    %v211 = vld [vmem:[#allocation2 + $0x24] sm:$0xf]
    %v212 = vld [vmem:[#allocation2 + $0x28] sm:$0xf]
    %v213 = vld [vmem:[#allocation2 + $0x2c] sm:$0xf]
    %v214 = vld [vmem:[#allocation2 + $0x30] sm:$0xf]
    %v215 = vld [vmem:[#allocation2 + $0x34] sm:$0xf]
    %v216 = vld [vmem:[#allocation2 + $0x38] sm:$0xf]
    %v217 = vld [vmem:[#allocation2 + $0x3c] sm:$0xf]
    %v218 = vld [vmem:[#allocation2 + $0x40] sm:$0xf]
    %v219 = vld [vmem:[#allocation2 + $0x44] sm:$0xf]
    %v220 = vld [vmem:[#allocation2 + $0x48] sm:$0xf]
    %v221 = vld [vmem:[#allocation2 + $0x4c] sm:$0xf]
    %v222 = vld [vmem:[#allocation2 + $0x50] sm:$0xf]
    %v223 = vld [vmem:[#allocation2 + $0x54] sm:$0xf]
    %v224 = vld [vmem:[#allocation2 + $0x58] sm:$0xf]
    %v225 = vld [vmem:[#allocation2 + $0x5c] sm:$0xf]
    %v226 = vld [vmem:[#allocation2 + $0x60] sm:$0xf]
    %v227 = vld [vmem:[#allocation2 + $0x64] sm:$0xf]
    %v228 = vld [vmem:[#allocation2 + $0x68] sm:$0xf]
    %v229 = vld [vmem:[#allocation2 + $0x6c] sm:$0xf]
    %v230 = vld [vmem:[#allocation2 + $0x70] sm:$0xf]
    %v231 = vld [vmem:[#allocation2 + $0x74] sm:$0xf]
    %v232 = vld [vmem:[#allocation2 + $0x78] sm:$0xf]
    %v233 = vld [vmem:[#allocation2 + $0x7c] sm:$0xf]
    %v234 = vld [vmem:[#allocation2 + $0x80] sm:$0xf]
    %v235 = vld [vmem:[#allocation2 + $0x84] sm:$0xf]
    %v236 = vld [vmem:[#allocation2 + $0x88] sm:$0xf]
    %v237 = vld [vmem:[#allocation2 + $0x8c] sm:$0xf]
    %v238 = vld [vmem:[#allocation2 + $0x90] sm:$0xf]
    %v239 = vld [vmem:[#allocation2 + $0x94] sm:$0xf]
    %v240 = vld [vmem:[#allocation2 + $0x98] sm:$0xf]
    %v241 = vld [vmem:[#allocation2 + $0x9c] sm:$0xf]
    %v242 = vld [vmem:[#allocation2 + $0xa0] sm:$0xf]
    %v243 = vld [vmem:[#allocation2 + $0xa4] sm:$0xf]
    %v244 = vld [vmem:[#allocation2 + $0xa8] sm:$0xf]
    %v245 = vld [vmem:[#allocation2 + $0xac] sm:$0xf]
    %v246 = vld [vmem:[#allocation2 + $0xb0] sm:$0xf]
    %v247 = vld [vmem:[#allocation2 + $0xb4] sm:$0xf]
    %v248 = vld [vmem:[#allocation2 + $0xb8] sm:$0xf]
    %v249 = vld [vmem:[#allocation2 + $0xbc] sm:$0xf]
    %v250 = vld [vmem:[#allocation2 + $0xc0] sm:$0xf]
    %v251 = vld [vmem:[#allocation2 + $0xc4] sm:$0xf]
    %v252 = vld [vmem:[#allocation2 + $0xc8] sm:$0xf]
    %v253 = vld [vmem:[#allocation2 + $0xcc] sm:$0xf]
    %v254 = vld [vmem:[#allocation2 + $0xd0] sm:$0xf]
    %v255 = vld [vmem:[#allocation2 + $0xd4] sm:$0xf]
    %v256 = vld [vmem:[#allocation2 + $0xd8] sm:$0xf]
    %v257 = vld [vmem:[#allocation2 + $0xdc] sm:$0xf]
    %v258 = vld [vmem:[#allocation2 + $0xe0] sm:$0xf]
    %v259 = vld [vmem:[#allocation2 + $0xe4] sm:$0xf]
    %v260 = vld [vmem:[#allocation2 + $0xe8] sm:$0xf]
    %v261 = vld [vmem:[#allocation2 + $0xec] sm:$0xf]
    %v262 = vld [vmem:[#allocation2 + $0xf0] sm:$0xf]
    %v263 = vld [vmem:[#allocation2 + $0xf4] sm:$0xf]
    %v264 = vld [vmem:[#allocation2 + $0xf8] sm:$0xf]
    %v265 = vld [vmem:[#allocation2 + $0xfc] sm:$0xf]
    %v266 = vld [vmem:[%s4] sm:$0x1]
    %v268 = vlaneseq
    %v269 = vshrl.u32 %v268, 7
    %v270 = vsub.s32 0, %v269
    %v271 = vrot.slane %v266, %v270
    %v337 = vunpack.c.l.b16 %v202
    %v338 = vunpack.c.l.b16 %v203
    %v339 = vunpack.c.l.b16 %v204
    %v340 = vunpack.c.l.b16 %v205
    %v341 = vunpack.c.l.b16 %v206
    %v342 = vunpack.c.l.b16 %v207
    %v343 = vunpack.c.l.b16 %v208
    %v344 = vunpack.c.l.b16 %v209
    %v345 = vunpack.c.l.b16 %v210
    %v346 = vunpack.c.l.b16 %v211
    %v347 = vunpack.c.l.b16 %v212
    %v348 = vunpack.c.l.b16 %v213
    %v349 = vunpack.c.l.b16 %v214
    %v350 = vunpack.c.l.b16 %v215
    %v351 = vunpack.c.l.b16 %v216
    %v352 = vunpack.c.l.b16 %v217
    %v353 = vunpack.c.l.b16 %v218
    %v354 = vunpack.c.l.b16 %v219
    %v355 = vunpack.c.l.b16 %v220
    %v356 = vunpack.c.l.b16 %v221
    %v357 = vunpack.c.l.b16 %v222
    %v358 = vunpack.c.l.b16 %v223
    %v359 = vunpack.c.l.b16 %v224
    %v360 = vunpack.c.l.b16 %v225
    %v361 = vunpack.c.l.b16 %v226
    %v362 = vunpack.c.l.b16 %v227
    %v363 = vunpack.c.l.b16 %v228
    %v364 = vunpack.c.l.b16 %v229
    %v365 = vunpack.c.l.b16 %v230
    %v366 = vunpack.c.l.b16 %v231
    %v367 = vunpack.c.l.b16 %v232
    %v368 = vunpack.c.l.b16 %v233
    %v369 = vunpack.c.l.b16 %v234
    %v370 = vunpack.c.l.b16 %v235
    %v371 = vunpack.c.l.b16 %v236
    %v372 = vunpack.c.l.b16 %v237
    %v373 = vunpack.c.l.b16 %v238
    %v374 = vunpack.c.l.b16 %v239
    %v375 = vunpack.c.l.b16 %v240
    %v376 = vunpack.c.l.b16 %v241
    %v377 = vunpack.c.l.b16 %v242
    %v378 = vunpack.c.l.b16 %v243
    %v379 = vunpack.c.l.b16 %v244
    %v380 = vunpack.c.l.b16 %v245
    %v381 = vunpack.c.l.b16 %v246
    %v382 = vunpack.c.l.b16 %v247
    %v383 = vunpack.c.l.b16 %v248
    %v384 = vunpack.c.l.b16 %v249
    %v385 = vunpack.c.l.b16 %v250
    %v386 = vunpack.c.l.b16 %v251
    %v387 = vunpack.c.l.b16 %v252
    %v388 = vunpack.c.l.b16 %v253
    %v389 = vunpack.c.l.b16 %v254
    %v390 = vunpack.c.l.b16 %v255
    %v391 = vunpack.c.l.b16 %v256
    %v392 = vunpack.c.l.b16 %v257
    %v393 = vunpack.c.l.b16 %v258
    %v394 = vunpack.c.l.b16 %v259
    %v395 = vunpack.c.l.b16 %v260
    %v396 = vunpack.c.l.b16 %v261
    %v397 = vunpack.c.l.b16 %v262
    %v398 = vunpack.c.l.b16 %v263
    %v399 = vunpack.c.l.b16 %v264
    %v400 = vunpack.c.l.b16 %v265
    %v401 = vpack.c.b16 %v338, %v337
    %v402 = vpack.c.b16 %v340, %v339
    %v403 = vpack.c.b16 %v342, %v341
    %v404 = vpack.c.b16 %v344, %v343
    %v405 = vpack.c.b16 %v346, %v345
    %v406 = vpack.c.b16 %v348, %v347
    %v407 = vpack.c.b16 %v350, %v349
    %v408 = vpack.c.b16 %v352, %v351
    %v409 = vpack.c.b16 %v354, %v353
    %v410 = vpack.c.b16 %v356, %v355
    %v411 = vpack.c.b16 %v358, %v357
    %v412 = vpack.c.b16 %v360, %v359
    %v413 = vpack.c.b16 %v362, %v361
    %v414 = vpack.c.b16 %v364, %v363
    %v415 = vpack.c.b16 %v366, %v365
    %v416 = vpack.c.b16 %v368, %v367
    %v417 = vpack.c.b16 %v370, %v369
    %v418 = vpack.c.b16 %v372, %v371
    %v419 = vpack.c.b16 %v374, %v373
    %v420 = vpack.c.b16 %v376, %v375
    %v421 = vpack.c.b16 %v378, %v377
    %v422 = vpack.c.b16 %v380, %v379
    %v423 = vpack.c.b16 %v382, %v381
    %v424 = vpack.c.b16 %v384, %v383
    %v425 = vpack.c.b16 %v386, %v385
    %v426 = vpack.c.b16 %v388, %v387
    %v427 = vpack.c.b16 %v390, %v389
    %v428 = vpack.c.b16 %v392, %v391
    %v429 = vpack.c.b16 %v394, %v393
    %v430 = vpack.c.b16 %v396, %v395
    %v431 = vpack.c.b16 %v398, %v397
    %v432 = vpack.c.b16 %v400, %v399
    %465 = vmatprep.subr.bf16.mxu0 0
    %466 = vmatpush1.bf16.msra.mxu0 %v401
    %467 = vmatprep.subr.bf16.mxu0 0
    %468 = vmatpush1.bf16.msra.mxu0 %v402
    %469 = vmatprep.subr.bf16.mxu0 0
    %470 = vmatpush1.bf16.msra.mxu0 %v403
    %471 = vmatprep.subr.bf16.mxu0 0
    %472 = vmatpush1.bf16.msra.mxu0 %v404
    %473 = vmatprep.subr.bf16.mxu0 0
    %474 = vmatpush1.bf16.msra.mxu0 %v405
    %475 = vmatprep.subr.bf16.mxu0 0
    %476 = vmatpush1.bf16.msra.mxu0 %v406
    %477 = vmatprep.subr.bf16.mxu0 0
    %478 = vmatpush1.bf16.msra.mxu0 %v407
    %479 = vmatprep.subr.bf16.mxu0 0
    %480 = vmatpush1.bf16.msra.mxu0 %v408
    %481 = vmatprep.subr.bf16.mxu0 0
    %482 = vmatpush1.bf16.msra.mxu0 %v409
    %483 = vmatprep.subr.bf16.mxu0 0
    %484 = vmatpush1.bf16.msra.mxu0 %v410
    %485 = vmatprep.subr.bf16.mxu0 0
    %486 = vmatpush1.bf16.msra.mxu0 %v411
    %487 = vmatprep.subr.bf16.mxu0 0
    %488 = vmatpush1.bf16.msra.mxu0 %v412
    %489 = vmatprep.subr.bf16.mxu0 0
    %490 = vmatpush1.bf16.msra.mxu0 %v413
    %491 = vmatprep.subr.bf16.mxu0 0
    %492 = vmatpush1.bf16.msra.mxu0 %v414
    %493 = vmatprep.subr.bf16.mxu0 0
    %494 = vmatpush1.bf16.msra.mxu0 %v415
    %495 = vmatprep.subr.bf16.mxu0 0
    %496 = vmatpush1.bf16.msra.mxu0 %v416
    %497 = vmatprep.mubr.bf16.mxu0 %v199
    %498 = vmatmul.mubr.bf16.gmra.mrb[0].mxu0 %v198
    %v499 = vpop.f32.mrb[0].mxu0
    %v500 = vadd.f32 %v271, %v499
    %v501 = vpop.f32.mrb[0].mxu0
    %v502 = vpop.f32.mrb[0].mxu0
    %v503 = vpop.f32.mrb[0].mxu0
    %504 = vdwg.mxu0
    %505 = vmatprep.subr.bf16.mxu0 0
    %506 = vmatpush1.bf16.msra.mxu0 %v417
    %507 = vmatprep.subr.bf16.mxu0 0
    %508 = vmatpush1.bf16.msra.mxu0 %v418
    %509 = vmatprep.subr.bf16.mxu0 0
    %510 = vmatpush1.bf16.msra.mxu0 %v419
    %511 = vmatprep.subr.bf16.mxu0 0
    %512 = vmatpush1.bf16.msra.mxu0 %v420
    %513 = vmatprep.subr.bf16.mxu0 0
    %514 = vmatpush1.bf16.msra.mxu0 %v421
    %515 = vmatprep.subr.bf16.mxu0 0
    %516 = vmatpush1.bf16.msra.mxu0 %v422
    %517 = vmatprep.subr.bf16.mxu0 0
    %518 = vmatpush1.bf16.msra.mxu0 %v423
    %519 = vmatprep.subr.bf16.mxu0 0
    %520 = vmatpush1.bf16.msra.mxu0 %v424
    %521 = vmatprep.subr.bf16.mxu0 0
    %522 = vmatpush1.bf16.msra.mxu0 %v425
    %523 = vmatprep.subr.bf16.mxu0 0
    %524 = vmatpush1.bf16.msra.mxu0 %v426
    %525 = vmatprep.subr.bf16.mxu0 0
    %526 = vmatpush1.bf16.msra.mxu0 %v427
    %527 = vmatprep.subr.bf16.mxu0 0
    %528 = vmatpush1.bf16.msra.mxu0 %v428
    %529 = vmatprep.subr.bf16.mxu0 0
    %530 = vmatpush1.bf16.msra.mxu0 %v429
    %531 = vmatprep.subr.bf16.mxu0 0
    %532 = vmatpush1.bf16.msra.mxu0 %v430
    %533 = vmatprep.subr.bf16.mxu0 0
    %534 = vmatpush1.bf16.msra.mxu0 %v431
    %535 = vmatprep.subr.bf16.mxu0 0
    %536 = vmatpush1.bf16.msra.mxu0 %v432
    %537 = vmatprep.mubr.bf16.mxu0 %v201
    %538 = vmatmul.mubr.bf16.gmra.mrb[0].mxu0 %v200
    %v539 = vpop.f32.mrb[0].mxu0
    %v540 = vadd.f32 %v500, %v539
    %v541 = vpop.f32.mrb[0].mxu0
    %v542 = vpop.f32.mrb[0].mxu0
    %v543 = vpop.f32.mrb[0].mxu0
    %544 = vdwg.mxu0
    %545 = vst [vmem:[#allocation5] sm:$0xff] %v540
    // Predicated region
    $region26: #{clf_head.1} parent=1 // pred_check
      _
    $region27: #{clf_head.1} parent=1 // pred_check_branch
      %547 = sbr.rel (0) target = $region29
    $region28: #{clf_head.1} parent=1 // pred_region
      %s549 = ssub.s32 128, 128
      %550 = vsyncadd [#allocation4], %s549
      %s552 = sshll.u32 [#allocation5], 4
      %s553 = int_to_ptr.vmem [resolvable:$true] %s552
      %555 = dma.vmem_to_hbm [thread:$0]  %s553, 128, %s5, [#allocation4]
    $region29: #{clf_head.1} parent=1 // pred_fallthru
      _
    // Predicated region
    $region30: #{clf_head.1} parent=1 // pred_check
      _
    $region31: #{clf_head.1} parent=1 // pred_check_branch
      %557 = sbr.rel (0) target = $region33
    $region32: #{clf_head.1} parent=1 // pred_region
      %558 = dma.done [#allocation4], 128
    $region33: #{clf_head.1} parent=1 // pred_fallthru
      _
    %559 = vsyncpa [#allocation3], 1
    %560 = vsyncpa [#allocation4], 1

</llo_original>
